<compile_context>
chip_gen: v7x
topology: tpu7x:2x2x1
jax: 0.10.0
libtpu: 0.0.40
codegen_flags: <defaults>
</compile_context>

<pallas_src>
import functools

import jax
import jax.numpy as jnp
from jax.experimental import pallas as pl
from jax.experimental.pallas import tpu as pltpu

_F32 = jnp.float32
_BIG_NORM = 1e30                      # poison for padded rows/cols of the norms
_VMEM_BUDGET = 32 * (1 << 20)         # plan tiles/panels against this (v7x-safe)
_VMEM_LIMIT_CAP = 48 * (1 << 20)      # never request more scoped VMEM than this


# ---------------------------------------------------------------------------
# Helpers
# ---------------------------------------------------------------------------
def _round_up(x, m):
    return ((x + m - 1) // m) * m


def _compiler_params(est_bytes, semantics):
    kw = {"dimension_semantics": semantics}
    if est_bytes > 8 * (1 << 20):
        kw["vmem_limit_bytes"] = int(min(_VMEM_LIMIT_CAP, 1.5 * est_bytes))
    return pltpu.CompilerParams(**kw)


def _diag_vmem_estimate(t, d, itemsize):
    # 2 inputs x 2 buffers + f32 cast/diff temporaries + output block
    return 4 * t * d * itemsize + 3 * t * d * 4 + 4 * t * 4 + (1 << 20)


def _cost_vmem_estimate(t, p_cols, d, itemsize):
    blocks = 2 * t * d * itemsize            # f1 row block (double buffered)
    blocks += 2 * p_cols * d * itemsize      # resident f2 panel (double buffered)
    blocks += 2 * (t + p_cols + t) * 4       # sq1 / sq2 / out blocks
    temps = 6 * t * p_cols * 4               # dot, cost, iota, selects, ...
    return blocks + temps + (1 << 20)


# ---------------------------------------------------------------------------
# Exact diagonal term:  sum_i || f1_i - f2_i ||^2   (also the margin<=0 loss)
# ---------------------------------------------------------------------------
def _diag_sq_kernel(f1_ref, f2_ref, out_ref):
    d = f1_ref[...].astype(_F32) - f2_ref[...].astype(_F32)
    out_ref[...] = jnp.sum(d * d, axis=1, keepdims=True)        # (T, 1)


def _diag_sq_sum(f1, f2):
    n, d = f1.shape
    itemsize = jnp.dtype(f1.dtype).itemsize
    t = min(512, _round_up(n, 8))
    while t > 8 and _diag_vmem_estimate(t, d, itemsize) > _VMEM_BUDGET:
        t = max(8, (t // 2) // 8 * 8)
    n_pad = _round_up(n, t)
    if n_pad != n:
        pad = ((0, n_pad - n), (0, 0))
        f1 = jnp.pad(f1, pad)          # padded rows: diff == 0 -> contribute 0
        f2 = jnp.pad(f2, pad)
    est = _diag_vmem_estimate(t, d, itemsize)
    parts = pl.pallas_call(
        _diag_sq_kernel,
        out_shape=jax.ShapeDtypeStruct((n_pad, 1), _F32),
        grid_spec=pltpu.PrefetchScalarGridSpec(
            num_scalar_prefetch=0,
            grid=(n_pad // t,),
            in_specs=[pl.BlockSpec((t, d), lambda i: (i, 0)),
                      pl.BlockSpec((t, d), lambda i: (i, 0))],
            out_specs=pl.BlockSpec((t, 1), lambda i: (i, 0))),
        compiler_params=_compiler_params(est, ("parallel",)),
    )(f1, f2)
    return jnp.sum(parts)


# ---------------------------------------------------------------------------
# margin > 0 pairwise-cost kernel (resident f2 column panels, streamed f1 rows)
# ---------------------------------------------------------------------------
def _cost_kernel(f1_ref, f2_ref, sq1_ref, sq2_ref, out_ref, *,
                 margin, max_violation, row_tile, panel_cols):
    p = pl.program_id(0)                      # column-panel index (outer axis)
    i = pl.program_id(1)                      # row-block index   (inner axis)

    # Cross term on the MXU in the operand dtype, f32 accumulation.
    dot = jax.lax.dot_general(f1_ref[...], f2_ref[...],
                              (((1,), (1,)), ((), ())),
                              preferred_element_type=_F32)       # (T, P)

    # ||f1_r - f2_c||^2 from precomputed norms.  Padded rows/cols carry a huge
    # poisoned norm, which makes their cost exactly 0 below.
    sq_dist = jnp.maximum(sq1_ref[...] + sq2_ref[...] - 2.0 * dot, 0.0)
    cost = jnp.maximum(jnp.float32(margin) - jnp.sqrt(sq_dist), 0.0)

    # Zero the true-diagonal entries (global row == global col), as the
    # reference does before squaring / row-max.
    col = jax.lax.broadcasted_iota(jnp.int32, cost.shape, 1)
    row = jax.lax.broadcasted_iota(jnp.int32, (cost.shape[0], 1), 0)
    diag_col = row + (i * row_tile - p * panel_cols)
    cost = jnp.where(col == diag_col, jnp.float32(0.0), cost)

    if max_violation:
        out_ref[...] = jnp.max(cost, axis=1, keepdims=True)          # (T, 1)
    else:
        out_ref[...] = jnp.sum(cost * cost, axis=1, keepdims=True)   # (T, 1)


def _pairwise_cost(f1p, f2p, sq1, sq2, *, margin, max_violation, t, n_pad):
    """Per-(panel, row) partials, shape (n_panels, n_pad):
       max_violation=False -> per-row sum of cost^2 over the panel's columns
       max_violation=True  -> per-row max of cost over the panel's columns
    """
    d = f1p.shape[1]
    itemsize = jnp.dtype(f1p.dtype).itemsize
    nb = n_pad // t

    # Largest column panel (a divisor of the row-block count) that fits the
    # VMEM budget; k == nb keeps all of f2 resident for the whole grid.
    k = 1
    for cand in range(nb, 0, -1):
        if nb % cand == 0 and \
                _cost_vmem_estimate(t, cand * t, d, itemsize) <= _VMEM_BUDGET:
            k = cand
            break
    panel = k * t
    n_panels = n_pad // panel
    est = _cost_vmem_estimate(t, panel, d, itemsize)

    kernel = functools.partial(_cost_kernel,
                               margin=float(margin),
                               max_violation=bool(max_violation),
                               row_tile=t, panel_cols=panel)

    out = pl.pallas_call(
        kernel,
        out_shape=jax.ShapeDtypeStruct((n_panels * n_pad, 1), _F32),
        grid_spec=pltpu.PrefetchScalarGridSpec(
            num_scalar_prefetch=0,
            grid=(n_panels, nb),     # panel OUTER: each f2 panel is DMA'd once
            in_specs=[
                pl.BlockSpec((t, d), lambda p, i: (i, 0)),      # f1 row block
                pl.BlockSpec((panel, d), lambda p, i: (p, 0)),  # resident f2 panel
                pl.BlockSpec((t, 1), lambda p, i: (i, 0)),      # ||f1||^2 (poisoned pad)
                pl.BlockSpec((1, panel), lambda p, i: (0, p)),  # ||f2||^2 (poisoned pad)
            ],
            out_specs=pl.BlockSpec((t, 1), lambda p, i: (p * nb + i, 0))),
        compiler_params=_compiler_params(est, ("parallel", "parallel")),
    )(f1p, f2p, sq1, sq2)
    return out.reshape(n_panels, n_pad)


# ---------------------------------------------------------------------------
# Public entry point (PyTorch L2ContrastiveLoss.forward semantics)
# ---------------------------------------------------------------------------
def l2_contrastive_loss(feature1, feature2, *, margin=0.0, max_violation=False,
                        dot_dtype=None):
    assert feature1.ndim == 2 and feature1.shape == feature2.shape
    n, d = feature1.shape

    # Exact diagonal distances (direct difference; always needed).
    diag_term = _diag_sq_sum(feature1, feature2)

    if float(margin) <= 0.0:
        # scores >= 0  =>  clamp(margin - scores, 0) == 0 everywhere.
        return diag_term / jnp.float32(2 * n)

    # ---------------- margin > 0: tiled pairwise cost ----------------------
    itemsize = jnp.dtype(dot_dtype if dot_dtype is not None
                         else feature1.dtype).itemsize
    t = min(256, _round_up(n, 8))                     # 128-multiple for n >= 128
    t_floor = 8 if _round_up(n, 8) <= 128 else 128
    while t > t_floor and _cost_vmem_estimate(t, t, d, itemsize) > _VMEM_BUDGET:
        t = max(t_floor, (t // 2) // 8 * 8)
    n_pad = _round_up(n, t)
    pad = n_pad - n

    f1p, f2p = feature1, feature2
    if pad:
        f1p = jnp.pad(f1p, ((0, pad), (0, 0)))
        f2p = jnp.pad(f2p, ((0, pad), (0, 0)))
    if dot_dtype is not None and f1p.dtype != dot_dtype:
        f1p = f1p.astype(dot_dtype)
        f2p = f2p.astype(dot_dtype)

    # Precomputed squared norms in f32 from the original-precision inputs.
    # Padded rows/cols get a huge norm -> their cost is exactly 0 in-kernel.
    f1_32 = feature1.astype(_F32)
    f2_32 = feature2.astype(_F32)
    sq1 = jnp.sum(f1_32 * f1_32, axis=1, keepdims=True)           # (n, 1)
    sq2 = jnp.sum(f2_32 * f2_32, axis=1)[None, :]                 # (1, n)
    if pad:
        sq1 = jnp.pad(sq1, ((0, pad), (0, 0)), constant_values=_BIG_NORM)
        sq2 = jnp.pad(sq2, ((0, 0), (0, pad)), constant_values=_BIG_NORM)

    parts = _pairwise_cost(f1p, f2p, sq1, sq2, margin=margin,
                           max_violation=max_violation, t=t, n_pad=n_pad)

    if max_violation:
        row_max = jnp.max(parts, axis=0)              # max over column panels
        cost_term = jnp.sum(row_max * row_max)
    else:
        cost_term = jnp.sum(parts)
    return (cost_term + diag_term) / jnp.float32(2 * n)


# ---------------------------------------------------------------------------
# Pure-JAX reference (mirrors the PyTorch module) + demo
# ---------------------------------------------------------------------------
def _reference(f1, f2, margin, max_violation):
    f1 = f1.astype(_F32)
    f2 = f2.astype(_F32)
    n = f1.shape[0]
    diff = f1[:, None, :] - f2[None, :, :]
    scores = jnp.sqrt(jnp.sum(diff * diff, axis=-1))
    diag = jnp.diagonal(scores)
    cost = jnp.maximum(jnp.float32(margin) - scores, 0.0)
    cost = jnp.where(jnp.eye(n, dtype=bool), 0.0, cost)
    if max_violation:
        cost = jnp.max(cost, axis=1)
    return (jnp.sum(cost ** 2) + jnp.sum(diag ** 2)) / jnp.float32(2 * n)


if __name__ == "__main__":
    key = jax.random.PRNGKey(0)
    k1, k2, k3, k4 = jax.random.split(key, 4)

    N, D = 8, 32                         # batch of 8 embeddings, hidden = 32
    f1 = jax.random.normal(k1, (N, D), dtype=jnp.float32)
    f2 = jax.random.normal(k2, (N, D), dtype=jnp.float32)
    # A non-multiple-of-8 batch to exercise the padding / poisoned-norm path.
    M = 12
    g1 = jax.random.normal(k3, (M, D), dtype=jnp.float32)
    g2 = jax.random.normal(k4, (M, D), dtype=jnp.float32)

    cases = [
        (f1, f2, dict(margin=0.0, max_violation=False)),    # default -> diag-only path
        (f1, f2, dict(margin=10.0, max_violation=False)),   # tiled pairwise path
        (f1, f2, dict(margin=10.0, max_violation=True)),    # row-max variant
        (g1, g2, dict(margin=10.0, max_violation=False)),   # padded rows/cols
        (g1, g2, dict(margin=10.0, max_violation=True)),
    ]
    for a, b, cfg in cases:
        got = l2_contrastive_loss(a, b, **cfg)
        jax.block_until_ready(got)
        want = _reference(a, b, **cfg)
        assert bool(jnp.allclose(got, want, rtol=1e-4, atol=1e-4)), (cfg, got, want)

    # Optional bf16 MXU-operand path (native-rate dot); looser tolerance.
    got_bf16 = l2_contrastive_loss(f1, f2, margin=10.0, max_violation=False,
                                   dot_dtype=jnp.bfloat16)
    jax.block_until_ready(got_bf16)
    want = _reference(f1, f2, 10.0, False)
    assert bool(jnp.allclose(got_bf16, want, rtol=2e-2, atol=2e-2)), (got_bf16, want)

    print("KERNEL_OK")
</pallas_src>

<mosaic_0001>
module attributes {stable_mosaic.version = 11 : i64} {
  func.func @_diag_sq_kernel(%arg0: i32, %arg1: memref<8x32xf32, #tpu.memory_space<vmem>>, %arg2: memref<8x32xf32, #tpu.memory_space<vmem>>, %arg3: memref<8x1xf32, #tpu.memory_space<vmem>>) attributes {dimension_semantics = [#tpu.dimension_semantics<parallel>], iteration_bounds = array<i64: 1>, scalar_prefetch = 0 : i64, scratch_operands = 0 : i64, tpu.core_type = #tpu.core_type<tc>, window_params = [{transform_indices = @transform_0, window_bounds = array<i64: 8, 32>}, {transform_indices = @transform_1, window_bounds = array<i64: 8, 32>}, {transform_indices = @transform_2, window_bounds = array<i64: 8, 1>}]} {
    %c0 = arith.constant 0 : index
    %c0_0 = arith.constant 0 : index
    %0 = vector.load %arg1[%c0, %c0_0] : memref<8x32xf32, #tpu.memory_space<vmem>>, vector<8x32xf32>
    %c0_1 = arith.constant 0 : index
    %c0_2 = arith.constant 0 : index
    %1 = vector.load %arg2[%c0_1, %c0_2] : memref<8x32xf32, #tpu.memory_space<vmem>>, vector<8x32xf32>
    %2 = arith.subf %0, %1 : vector<8x32xf32>
    %3 = arith.mulf %2, %2 : vector<8x32xf32>
    %cst = arith.constant dense<0.000000e+00> : vector<8xf32>
    %4 = vector.multi_reduction <add>, %3, %cst [1] : vector<8x32xf32> to vector<8xf32>
    %5 = vector.shape_cast %4 : vector<8xf32> to vector<8x1xf32>
    %c0_3 = arith.constant 0 : index
    %c0_4 = arith.constant 0 : index
    %6 = vector.load %arg3[%c0_3, %c0_4] : memref<8x1xf32, #tpu.memory_space<vmem>>, vector<8x1xf32>
    tpu.vector_store %arg3[%c0_3, %c0_4], %5 {strides = array<i32>} : memref<8x1xf32, #tpu.memory_space<vmem>>, vector<8x1xf32>,
    return
  }
  func.func @transform_0(%arg0: i32) -> (i32, i32) {
    %c0_i32 = arith.constant 0 : i32
    %c0_i32_0 = arith.constant 0 : i32
    return %arg0, %c0_i32 : i32, i32
  }
  func.func @transform_1(%arg0: i32) -> (i32, i32) {
    %c0_i32 = arith.constant 0 : i32
    %c0_i32_0 = arith.constant 0 : i32
    return %arg0, %c0_i32 : i32, i32
  }
  func.func @transform_2(%arg0: i32) -> (i32, i32) {
    %c0_i32 = arith.constant 0 : i32
    %c0_i32_0 = arith.constant 0 : i32
    return %arg0, %c0_i32 : i32, i32
  }
}

</mosaic_0001>

<llo_original>
// kernel: tpu_custom_call.1
$region0: #{tpu_custom_call.1}
  #allocation0 [shape = 'u32[]', space=smem, size = 0x4, offset = 0x4, fixed_abs, tag = 'smem constant byte address 0x4 - core index']
  #allocation1 [shape = 'u32[144,128]{1,0:T(1,128)}', space=vmem, size = 0x12000, scoped, tag = 'internal scratch']
  %s0 = inlined_call_operand.hbm [shape: f32[8,32], index: 0, kind: input, shape index: {}]
  %s1 = inlined_call_operand.hbm [shape: f32[8,32], index: 1, kind: input, shape index: {}]
  %s2 = inlined_call_operand.vmem [shape: f32[8,1], index: 2, kind: output, shape index: {}]
  %s3 = sld [smem:[#allocation0]]
  $region26: #{tpu_custom_call.1} parent=0
    _
  %s5 = ssub.s32 1, %s3
  %s6 = scalar_select 0, %s5, %s3
  $region1: #{tpu_custom_call.1} parent=0
    #allocation2 [shape = 'u8[4096]{0}', space=vmem, size = 0x1000, scoped, tag = 'input window, operand 0, single buffered']
    #allocation3 [shape = 's32[1]{0}', space=sflag, size = 0x4, scoped, tag = 'scoped memory for tpu_custom_call.1']
    #allocation4 [shape = 'u8[4096]{0}', space=vmem, size = 0x1000, scoped, tag = 'input window, operand 1, single buffered']
    #allocation5 [shape = 's32[1]{0}', space=sflag, size = 0x4, scoped, tag = 'scoped memory for tpu_custom_call.1']
    %7 = vsyncpa [#allocation3], 0
    %8 = vsyncpa [#allocation5], 0
    // Predicated region
    $region2: #{tpu_custom_call.1} parent=1 // pred_check
      _
    $region3: #{tpu_custom_call.1} parent=1 // pred_check_branch
      %10 = sbr.rel (0) target = $region5
    $region4: #{tpu_custom_call.1} parent=1 // pred_region
      %s12 = ssub.s32 128, 128
      %13 = vsyncadd [#allocation3], %s12
      %s15 = sshll.u32 [#allocation2], 4
      %s16 = int_to_ptr.vmem [resolvable:$true] %s15
      %18 = dma.hbm_to_vmem [thread:$0]  %s0, 128, %s16, [#allocation3]
    $region5: #{tpu_custom_call.1} parent=1 // pred_fallthru
      _
    // Predicated region
    $region6: #{tpu_custom_call.1} parent=1 // pred_check
      _
    $region7: #{tpu_custom_call.1} parent=1 // pred_check_branch
      %20 = sbr.rel (0) target = $region9
    $region8: #{tpu_custom_call.1} parent=1 // pred_region
      %s22 = ssub.s32 128, 128
      %23 = vsyncadd [#allocation5], %s22
      %s25 = sshll.u32 [#allocation4], 4
      %s26 = int_to_ptr.vmem [resolvable:$true] %s25
      %28 = dma.hbm_to_vmem [thread:$0]  %s1, 128, %s26, [#allocation5]
    $region9: #{tpu_custom_call.1} parent=1 // pred_fallthru
      _
    // Predicated region
    $region10: #{tpu_custom_call.1} parent=1 // pred_check
      _
    $region11: #{tpu_custom_call.1} parent=1 // pred_check_branch
      %30 = sbr.rel (0) target = $region13
    $region12: #{tpu_custom_call.1} parent=1 // pred_region
      %31 = dma.done [#allocation3], 128
    $region13: #{tpu_custom_call.1} parent=1 // pred_fallthru
      _
    // Predicated region
    $region14: #{tpu_custom_call.1} parent=1 // pred_check
      _
    $region15: #{tpu_custom_call.1} parent=1 // pred_check_branch
      %33 = sbr.rel (0) target = $region17
    $region16: #{tpu_custom_call.1} parent=1 // pred_region
      %34 = dma.done [#allocation5], 128
    $region17: #{tpu_custom_call.1} parent=1 // pred_fallthru
      _
    %v35 = vld [vmem:[#allocation2] sm:$0xff]
    %v36 = vld [vmem:[#allocation4] sm:$0xff]
    %v37 = vsub.f32 %v35, %v36
    %v38 = vmul.f32 %v37, %v37
    %vm39 = vcmask 261120
    %v40 = vsel %vm39, %v38, 0.0
    %41 = vadd.xlane.f32.xlu0 %v40
    %v42 = vpop.xlane.xlu0 %41
    %vm43 = vcmask 7168
    %44 = vst.msk [vmem:[%s2] sm:$0xff] %vm43, %v42
    // Predicated region
    $region18: #{tpu_custom_call.1} parent=1 // pred_check
      _
    $region19: #{tpu_custom_call.1} parent=1 // pred_check_branch
      %46 = sbr.rel (0) target = $region21
    $region20: #{tpu_custom_call.1} parent=1 // pred_region
      _
    $region21: #{tpu_custom_call.1} parent=1 // pred_fallthru
      _
    // Predicated region
    $region22: #{tpu_custom_call.1} parent=1 // pred_check
      _
    $region23: #{tpu_custom_call.1} parent=1 // pred_check_branch
      %48 = sbr.rel (0) target = $region25
    $region24: #{tpu_custom_call.1} parent=1 // pred_region
      _
    $region25: #{tpu_custom_call.1} parent=1 // pred_fallthru
      _
    %49 = vsyncpa [#allocation3], 1
    %50 = vsyncpa [#allocation5], 1

</llo_original>
